<compile_context>
chip_gen: v7x
topology: tpu7x:2x2x1
jax: 0.10.0
libtpu: 0.0.40
codegen_flags: <defaults>
</compile_context>

<pallas_src>
import jax
import jax.numpy as jnp
from jax.experimental import pallas as pl
from jax.experimental.pallas import tpu as pltpu

_LANES = 128


def _round_up(x, m):
    return (x + m - 1) // m * m


def _elu(x):
    # ELU(alpha=1). Clamp the untaken branch so exp never overflows to +inf.
    # TODO(synk): jnp.expm1 would match jax.nn.elu slightly better near 0.
    return jnp.where(x > 0, x, jnp.exp(jnp.minimum(x, 0.0)) - 1.0)


def _critic_kernel(x_ref, w1_ref, w2s_ref, w2a_ref, w3_ref, small_ref, out_ref):
    x_in = x_ref[...]                     # (TB, KP) = [state | action | 0-pad]

    b1 = small_ref[0:1, :]                # (1, W) biases, zero-padded lanes
    b2 = small_ref[1:2, :]
    b3 = small_ref[2:3, :]
    w4 = small_ref[3:4, :]                # fc4 weight as a row (zero-padded)
    b4 = small_ref[4:5, 0:1]              # (1, 1)

    # fcs1 + ELU.  Action / pad lanes of x_in hit zero rows of w1, so this is
    # exactly state @ W1; padded output lanes stay 0 through ELU (b1 padded 0).
    xs = _elu(jnp.dot(x_in, w1_ref[...],
                      preferred_element_type=jnp.float32) + b1)

    # fc2 on concat([xs, action], 1) == xs @ W2s + x_in @ W2a_embedded.
    x = _elu(jnp.dot(xs, w2s_ref[...], preferred_element_type=jnp.float32)
             + jnp.dot(x_in, w2a_ref[...], preferred_element_type=jnp.float32)
             + b2)

    # fc3 + ELU.
    x = _elu(jnp.dot(x, w3_ref[...],
                     preferred_element_type=jnp.float32) + b3)

    # fc4 (Q head): VPU broadcast-multiply + lane reduction.
    out_ref[...] = jnp.sum(x * w4, axis=-1, keepdims=True) + b4


def pack_critic_params(params, full_state_size, full_action_size, hidden_layers):
    """Pack per-layer params into lane-dense (128-wide) kernel inputs."""
    w1, b1, w2s, w2a, b2, w3, b3, w4, b4 = params
    h1, h2, h3 = hidden_layers
    W = _round_up(max(h1, h2, h3), _LANES)                       # common width
    KP = _round_up(full_state_size + full_action_size, _LANES)   # merged input

    def pad_to(m, rows, cols):
        return jnp.pad(m, ((0, rows - m.shape[0]), (0, cols - m.shape[1])))

    # fc1 weight embedded in merged-input coordinates (rows 0:s = w1, rest 0).
    w1c = pad_to(w1, KP, W).astype(jnp.float32)
    # action part of fc2 embedded at rows s:s+a of the merged input.
    w2ac = jnp.zeros((KP, W), jnp.float32)
    w2ac = w2ac.at[full_state_size:full_state_size + full_action_size, :h2].set(
        w2a.astype(jnp.float32))
    w2sp = pad_to(w2s, W, W).astype(jnp.float32)
    w3p = pad_to(w3, W, W).astype(jnp.float32)

    small = jnp.zeros((8, W), jnp.float32)
    small = small.at[0, :h1].set(b1.reshape(-1))
    small = small.at[1, :h2].set(b2.reshape(-1))
    small = small.at[2, :h3].set(b3.reshape(-1))
    small = small.at[3, :h3].set(w4.reshape(-1))       # (h3,1) -> row
    small = small.at[4, 0].set(b4.reshape(-1)[0])

    return dict(w1=w1c, w2s=w2sp, w2a=w2ac, w3=w3p, small=small,
                s_dim=full_state_size, a_dim=full_action_size, kp=KP, w=W)


def critic_forward(state, action, packed, *, block_b=4096):
    B = state.shape[0]
    kp, w = packed["kp"], packed["w"]

    # Merge state+action into one lane-dense (B, KP) input: one DMA stream per
    # tile, full-K MXU passes for both fc1 and the action part of fc2.
    x_in = jnp.concatenate([state, action], axis=1).astype(jnp.float32)
    x_in = jnp.pad(x_in, ((0, 0), (0, kp - x_in.shape[1])))

    # Batch tiling: big tiles amortize the ~0.35us per-grid-step overhead, but
    # force >= 2 grid steps so the "parallel" batch axis can shard across the
    # two TensorCores on v7x (costs nothing on single-TC v5e/v6e).
    half = _round_up(max((B + 1) // 2, 8), 8)
    tb = min(block_b, half)
    bp = _round_up(B, tb)
    if bp // tb < 2:
        bp = 2 * tb
    if bp != B:
        x_in = jnp.pad(x_in, ((0, bp - B), (0, 0)))
    grid = (bp // tb,)
    # NOTE: block_b=4096 keeps double-buffered inputs + live activations well
    # under the default 32 MiB scoped VMEM on every generation (incl. v7x).

    # Weights / biases: constant index_map -> VMEM-resident across batch tiles.
    weight_keys = ("w1", "w2s", "w2a", "w3", "small")
    weight_specs = [pl.BlockSpec(packed[k].shape, lambda i: (0, 0))
                    for k in weight_keys]

    flops = 2 * bp * (kp * w + w * w + kp * w + w * w + w)
    bytes_accessed = 4 * (x_in.size
                          + sum(int(packed[k].size) for k in weight_keys)
                          + bp)

    q = pl.pallas_call(
        _critic_kernel,
        out_shape=jax.ShapeDtypeStruct((bp, 1), jnp.float32),
        grid_spec=pltpu.PrefetchScalarGridSpec(
            num_scalar_prefetch=0,
            grid=grid,
            in_specs=[pl.BlockSpec((tb, kp), lambda i: (i, 0))] + weight_specs,
            out_specs=pl.BlockSpec((tb, 1), lambda i: (i, 0)),
        ),
        compiler_params=pltpu.CompilerParams(
            dimension_semantics=("parallel",)),
        cost_estimate=pl.CostEstimate(
            flops=flops,
            transcendentals=3 * bp * w,
            bytes_accessed=bytes_accessed),
    )(x_in, *(packed[k] for k in weight_keys))

    return q[:B]


def init_critic_params(key, full_state_size, full_action_size, hidden_layers):
    """Deterministic init replicating the module's reset_parameters() quirks
    (hidden_init uses weight.size()[0] == out_features; fc4 keeps default init)."""
    fc1, fc2, fc3 = hidden_layers
    ks = jax.random.split(key, 8)

    def uni(k, shape, lim):
        return jax.random.uniform(k, shape, jnp.float32, -lim, lim)

    # weights stored as (in, out)
    lim1 = 1.0 / jnp.sqrt(fc1)
    w1 = uni(ks[0], (full_state_size, fc1), lim1)
    b1 = uni(ks[1], (1, fc1), 1.0 / jnp.sqrt(full_state_size))

    lim2 = 1.0 / jnp.sqrt(fc2)
    w2 = uni(ks[2], (fc1 + full_action_size, fc2), lim2)
    b2 = uni(ks[3], (1, fc2), 1.0 / jnp.sqrt(fc1 + full_action_size))
    w2s, w2a = w2[:fc1, :], w2[fc1:, :]

    w3 = uni(ks[4], (fc2, fc3), 0.003)
    b3 = uni(ks[5], (1, fc3), 1.0 / jnp.sqrt(fc2))

    lim4 = 1.0 / jnp.sqrt(fc3)
    w4 = uni(ks[6], (fc3, 1), lim4)
    b4 = uni(ks[7], (1, 1), lim4)

    return (w1, b1, w2s, w2a, b2, w3, b3, w4, b4)


def critic_reference(state, action, params):
    w1, b1, w2s, w2a, b2, w3, b3, w4, b4 = params
    xs = jax.nn.elu(state @ w1 + b1)
    x = jnp.concatenate([xs, action], axis=1)
    w2 = jnp.concatenate([w2s, w2a], axis=0)
    x = jax.nn.elu(x @ w2 + b2)
    x = jax.nn.elu(x @ w3 + b3)
    return x @ w4 + b4


if __name__ == "__main__":
    B = 8
    FULL_STATE = 48
    FULL_ACTION = 4
    HIDDEN = (64, 64, 32)

    key = jax.random.PRNGKey(0)
    k_state, k_action, k_params = jax.random.split(key, 3)

    state = jax.random.normal(k_state, (B, FULL_STATE), jnp.float32)
    action = jax.random.uniform(k_action, (B, FULL_ACTION), jnp.float32, -1.0, 1.0)
    params = init_critic_params(k_params, FULL_STATE, FULL_ACTION, HIDDEN)
    packed = pack_critic_params(params, FULL_STATE, FULL_ACTION, HIDDEN)

    q = critic_forward(state, action, packed)
    q = jax.block_until_ready(q)

    q_ref = critic_reference(state, action, params)
    assert q.shape == (B, 1)
    assert jnp.allclose(q, q_ref, atol=1e-5, rtol=1e-5)

    print("KERNEL_OK")
</pallas_src>

<mosaic_0001>
module attributes {stable_mosaic.version = 11 : i64} {
  func.func @_critic_kernel(%arg0: i32, %arg1: memref<8x128xf32, #tpu.memory_space<vmem>>, %arg2: memref<128x128xf32, #tpu.memory_space<vmem>>, %arg3: memref<128x128xf32, #tpu.memory_space<vmem>>, %arg4: memref<128x128xf32, #tpu.memory_space<vmem>>, %arg5: memref<128x128xf32, #tpu.memory_space<vmem>>, %arg6: memref<8x128xf32, #tpu.memory_space<vmem>>, %arg7: memref<8x1xf32, #tpu.memory_space<vmem>>) attributes {dimension_semantics = [#tpu.dimension_semantics<parallel>], iteration_bounds = array<i64: 2>, scalar_prefetch = 0 : i64, scratch_operands = 0 : i64, tpu.core_type = #tpu.core_type<tc>, window_params = [{transform_indices = @transform_0, window_bounds = array<i64: 8, 128>}, {pipeline_mode = #tpu.pipeline_mode<synchronous>, transform_indices = @transform_1, window_bounds = array<i64: 128, 128>}, {pipeline_mode = #tpu.pipeline_mode<synchronous>, transform_indices = @transform_2, window_bounds = array<i64: 128, 128>}, {pipeline_mode = #tpu.pipeline_mode<synchronous>, transform_indices = @transform_3, window_bounds = array<i64: 128, 128>}, {pipeline_mode = #tpu.pipeline_mode<synchronous>, transform_indices = @transform_4, window_bounds = array<i64: 128, 128>}, {pipeline_mode = #tpu.pipeline_mode<synchronous>, transform_indices = @transform_5, window_bounds = array<i64: 8, 128>}, {transform_indices = @transform_6, window_bounds = array<i64: 8, 1>}]} {
    %c0 = arith.constant 0 : index
    %c0_0 = arith.constant 0 : index
    %0 = vector.load %arg1[%c0, %c0_0] : memref<8x128xf32, #tpu.memory_space<vmem>>, vector<8x128xf32>
    %c0_1 = arith.constant 0 : index
    %c0_2 = arith.constant 0 : index
    %1 = vector.load %arg6[%c0_1, %c0_2] : memref<8x128xf32, #tpu.memory_space<vmem>>, vector<1x128xf32>
    %c1 = arith.constant 1 : index
    %c0_3 = arith.constant 0 : index
    %2 = vector.load %arg6[%c1, %c0_3] : memref<8x128xf32, #tpu.memory_space<vmem>>, vector<1x128xf32>
    %c2 = arith.constant 2 : index
    %c0_4 = arith.constant 0 : index
    %3 = vector.load %arg6[%c2, %c0_4] : memref<8x128xf32, #tpu.memory_space<vmem>>, vector<1x128xf32>
    %c3 = arith.constant 3 : index
    %c0_5 = arith.constant 0 : index
    %4 = vector.load %arg6[%c3, %c0_5] : memref<8x128xf32, #tpu.memory_space<vmem>>, vector<1x128xf32>
    %c4 = arith.constant 4 : index
    %c0_6 = arith.constant 0 : index
    %5 = vector.load %arg6[%c4, %c0_6] : memref<8x128xf32, #tpu.memory_space<vmem>>, vector<1x1xf32>
    %c0_7 = arith.constant 0 : index
    %c0_8 = arith.constant 0 : index
    %6 = vector.load %arg2[%c0_7, %c0_8] : memref<128x128xf32, #tpu.memory_space<vmem>>, vector<128x128xf32>
    %cst = arith.constant dense<0.000000e+00> : vector<8x128xf32>
    %7 = tpu.matmul %0, %6, %cst {dimension_numbers = #tpu.dot_dimension_numbers<[1], [0], [0], [1], [0, 0, 1, 1], [], []>} : vector<8x128xf32>, vector<128x128xf32>, vector<8x128xf32> -> vector<8x128xf32>
    %8 = vector.broadcast %1 : vector<1x128xf32> to vector<8x128xf32>
    %9 = arith.addf %7, %8 : vector<8x128xf32>
    %cst_9 = arith.constant 0.000000e+00 : f32
    %10 = vector.broadcast %cst_9 : f32 to vector<8x128xf32>
    %11 = arith.cmpf ogt, %9, %10 : vector<8x128xf32>
    %cst_10 = arith.constant 0.000000e+00 : f32
    %12 = vector.broadcast %cst_10 : f32 to vector<8x128xf32>
    %13 = arith.minimumf %9, %12 : vector<8x128xf32>
    %14 = math.exp %13 : vector<8x128xf32>
    %cst_11 = arith.constant 1.000000e+00 : f32
    %15 = vector.broadcast %cst_11 : f32 to vector<8x128xf32>
    %16 = arith.subf %14, %15 : vector<8x128xf32>
    %17 = arith.select %11, %9, %16 : vector<8x128xi1>, vector<8x128xf32>
    %c0_12 = arith.constant 0 : index
    %c0_13 = arith.constant 0 : index
    %18 = vector.load %arg3[%c0_12, %c0_13] : memref<128x128xf32, #tpu.memory_space<vmem>>, vector<128x128xf32>
    %cst_14 = arith.constant dense<0.000000e+00> : vector<8x128xf32>
    %19 = tpu.matmul %17, %18, %cst_14 {dimension_numbers = #tpu.dot_dimension_numbers<[1], [0], [0], [1], [0, 0, 1, 1], [], []>} : vector<8x128xf32>, vector<128x128xf32>, vector<8x128xf32> -> vector<8x128xf32>
    %c0_15 = arith.constant 0 : index
    %c0_16 = arith.constant 0 : index
    %20 = vector.load %arg4[%c0_15, %c0_16] : memref<128x128xf32, #tpu.memory_space<vmem>>, vector<128x128xf32>
    %cst_17 = arith.constant dense<0.000000e+00> : vector<8x128xf32>
    %21 = tpu.matmul %0, %20, %cst_17 {dimension_numbers = #tpu.dot_dimension_numbers<[1], [0], [0], [1], [0, 0, 1, 1], [], []>} : vector<8x128xf32>, vector<128x128xf32>, vector<8x128xf32> -> vector<8x128xf32>
    %22 = arith.addf %19, %21 : vector<8x128xf32>
    %23 = vector.broadcast %2 : vector<1x128xf32> to vector<8x128xf32>
    %24 = arith.addf %22, %23 : vector<8x128xf32>
    %cst_18 = arith.constant 0.000000e+00 : f32
    %25 = vector.broadcast %cst_18 : f32 to vector<8x128xf32>
    %26 = arith.cmpf ogt, %24, %25 : vector<8x128xf32>
    %cst_19 = arith.constant 0.000000e+00 : f32
    %27 = vector.broadcast %cst_19 : f32 to vector<8x128xf32>
    %28 = arith.minimumf %24, %27 : vector<8x128xf32>
    %29 = math.exp %28 : vector<8x128xf32>
    %cst_20 = arith.constant 1.000000e+00 : f32
    %30 = vector.broadcast %cst_20 : f32 to vector<8x128xf32>
    %31 = arith.subf %29, %30 : vector<8x128xf32>
    %32 = arith.select %26, %24, %31 : vector<8x128xi1>, vector<8x128xf32>
    %c0_21 = arith.constant 0 : index
    %c0_22 = arith.constant 0 : index
    %33 = vector.load %arg5[%c0_21, %c0_22] : memref<128x128xf32, #tpu.memory_space<vmem>>, vector<128x128xf32>
    %cst_23 = arith.constant dense<0.000000e+00> : vector<8x128xf32>
    %34 = tpu.matmul %32, %33, %cst_23 {dimension_numbers = #tpu.dot_dimension_numbers<[1], [0], [0], [1], [0, 0, 1, 1], [], []>} : vector<8x128xf32>, vector<128x128xf32>, vector<8x128xf32> -> vector<8x128xf32>
    %35 = vector.broadcast %3 : vector<1x128xf32> to vector<8x128xf32>
    %36 = arith.addf %34, %35 : vector<8x128xf32>
    %cst_24 = arith.constant 0.000000e+00 : f32
    %37 = vector.broadcast %cst_24 : f32 to vector<8x128xf32>
    %38 = arith.cmpf ogt, %36, %37 : vector<8x128xf32>
    %cst_25 = arith.constant 0.000000e+00 : f32
    %39 = vector.broadcast %cst_25 : f32 to vector<8x128xf32>
    %40 = arith.minimumf %36, %39 : vector<8x128xf32>
    %41 = math.exp %40 : vector<8x128xf32>
    %cst_26 = arith.constant 1.000000e+00 : f32
    %42 = vector.broadcast %cst_26 : f32 to vector<8x128xf32>
    %43 = arith.subf %41, %42 : vector<8x128xf32>
    %44 = arith.select %38, %36, %43 : vector<8x128xi1>, vector<8x128xf32>
    %45 = vector.broadcast %4 : vector<1x128xf32> to vector<8x128xf32>
    %46 = arith.mulf %44, %45 : vector<8x128xf32>
    %cst_27 = arith.constant dense<0.000000e+00> : vector<8xf32>
    %47 = vector.multi_reduction <add>, %46, %cst_27 [1] : vector<8x128xf32> to vector<8xf32>
    %48 = vector.shape_cast %47 : vector<8xf32> to vector<8x1xf32>
    %49 = vector.broadcast %5 : vector<1x1xf32> to vector<8x1xf32>
    %50 = arith.addf %48, %49 : vector<8x1xf32>
    %c0_28 = arith.constant 0 : index
    %c0_29 = arith.constant 0 : index
    %51 = vector.load %arg7[%c0_28, %c0_29] : memref<8x1xf32, #tpu.memory_space<vmem>>, vector<8x1xf32>
    tpu.vector_store %arg7[%c0_28, %c0_29], %50 {strides = array<i32>} : memref<8x1xf32, #tpu.memory_space<vmem>>, vector<8x1xf32>,
    return
  }
  func.func @transform_0(%arg0: i32) -> (i32, i32) {
    %c0_i32 = arith.constant 0 : i32
    %c0_i32_0 = arith.constant 0 : i32
    return %arg0, %c0_i32 : i32, i32
  }
  func.func @transform_1(%arg0: i32) -> (i32, i32) {
    %c0_i32 = arith.constant 0 : i32
    %c0_i32_0 = arith.constant 0 : i32
    %c0_i32_1 = arith.constant 0 : i32
    return %c0_i32, %c0_i32_0 : i32, i32
  }
  func.func @transform_2(%arg0: i32) -> (i32, i32) {
    %c0_i32 = arith.constant 0 : i32
    %c0_i32_0 = arith.constant 0 : i32
    %c0_i32_1 = arith.constant 0 : i32
    return %c0_i32, %c0_i32_0 : i32, i32
  }
  func.func @transform_3(%arg0: i32) -> (i32, i32) {
    %c0_i32 = arith.constant 0 : i32
    %c0_i32_0 = arith.constant 0 : i32
    %c0_i32_1 = arith.constant 0 : i32
    return %c0_i32, %c0_i32_0 : i32, i32
  }
  func.func @transform_4(%arg0: i32) -> (i32, i32) {
    %c0_i32 = arith.constant 0 : i32
    %c0_i32_0 = arith.constant 0 : i32
    %c0_i32_1 = arith.constant 0 : i32
    return %c0_i32, %c0_i32_0 : i32, i32
  }
  func.func @transform_5(%arg0: i32) -> (i32, i32) {
    %c0_i32 = arith.constant 0 : i32
    %c0_i32_0 = arith.constant 0 : i32
    %c0_i32_1 = arith.constant 0 : i32
    return %c0_i32, %c0_i32_0 : i32, i32
  }
  func.func @transform_6(%arg0: i32) -> (i32, i32) {
    %c0_i32 = arith.constant 0 : i32
    %c0_i32_0 = arith.constant 0 : i32
    return %arg0, %c0_i32 : i32, i32
  }
}

</mosaic_0001>

<llo_original>
// kernel: tpu_custom_call.1
$region0: #{tpu_custom_call.1}
  #allocation0 [shape = 'u32[]', space=smem, size = 0x4, offset = 0x4, fixed_abs, tag = 'smem constant byte address 0x4 - core index']
  #allocation1 [shape = 'u32[144,128]{1,0:T(1,128)}', space=vmem, size = 0x12000, scoped, tag = 'internal scratch']
  %s0 = inlined_call_operand.hbm [shape: f32[16,128], index: 0, kind: input, shape index: {}]
  %s1 = inlined_call_operand.hbm [shape: f32[128,128], index: 1, kind: input, shape index: {}]
  %s2 = inlined_call_operand.hbm [shape: f32[128,128], index: 2, kind: input, shape index: {}]
  %s3 = inlined_call_operand.hbm [shape: f32[128,128], index: 3, kind: input, shape index: {}]
  %s4 = inlined_call_operand.hbm [shape: f32[128,128], index: 4, kind: input, shape index: {}]
  %s5 = inlined_call_operand.vmem [shape: f32[8,128], index: 5, kind: input, shape index: {}]
  %s6 = inlined_call_operand.vmem [shape: f32[16,1], index: 6, kind: output, shape index: {}]
  %s7 = sld [smem:[#allocation0]]
  $region77: #{tpu_custom_call.1} parent=0
    _
  %s9 = ssub.s32 1, %s7
  %s10 = scalar_select 0, %s9, %s7
  $region1: #{tpu_custom_call.1} parent=0
    #allocation2 [shape = 'u8[8192]{0}', space=vmem, size = 0x2000, scoped, tag = 'input window, operand 0']
    #allocation3 [shape = 's32[2]{0}', space=sflag, size = 0x8, scoped, tag = 'scoped memory for tpu_custom_call.1']
    #allocation4 [shape = 'u8[65536]{0}', space=vmem, size = 0x10000, scoped, tag = 'input window, operand 1, single buffered']
    #allocation5 [shape = 's32[1]{0}', space=sflag, size = 0x4, scoped, tag = 'scoped memory for tpu_custom_call.1']
    #allocation6 [shape = 'u8[65536]{0}', space=vmem, size = 0x10000, scoped, tag = 'input window, operand 2, single buffered']
    #allocation7 [shape = 'u8[65536]{0}', space=vmem, size = 0x10000, scoped, tag = 'input window, operand 3, single buffered']
    #allocation8 [shape = 's32[1]{0}', space=sflag, size = 0x4, scoped, tag = 'scoped memory for tpu_custom_call.1']
    #allocation9 [shape = 'u8[65536]{0}', space=vmem, size = 0x10000, scoped, tag = 'input window, operand 4, single buffered']
    %11 = vsyncpa [#allocation3], 0
    %s12 = scalar_lea.sflag [#allocation3], 1
    %13 = vsyncpa %s12, 0
    %14 = vsyncpa [#allocation5], 0
    %15 = vsyncpa [#allocation8], 0
    loop: start=0, step=1, limit=4
    $region2: #{tpu_custom_call.1} parent=1 // loop_pre_header
      _
    $region3: #{tpu_custom_call.1} parent=1 // loop_header
      %s17 = sphi 0, %s21
      %p18 = scmp.ge.s32.totalorder %s17, 4
      %s27 = sphi 0, %s29
      %s30 = sphi 0, %s27
      %s31 = sphi 0, %s30
      %s47 = sphi 0, %s31
      %s51 = sphi 0, %s51
      %s53 = sphi 0, %s51
      %s54 = sphi 0, %s53
      %s68 = sphi 0, %s54
      %s72 = sphi 0, %s72
      %s74 = sphi 0, %s72
      %s75 = sphi 0, %s74
      %s89 = sphi 0, %s75
      %s93 = sphi 0, %s93
      %s95 = sphi 0, %s93
      %s96 = sphi 0, %s95
      %s110 = sphi 0, %s96
      %s114 = sphi 0, %s114
      %s116 = sphi 0, %s114
      %s117 = sphi 0, %s116
      %s131 = sphi 0, %s117
      %s135 = sphi 0, %s135
      %s137 = sphi 0, %s135
      %s138 = sphi 0, %s137
      %s152 = sphi 0, %s138
      %s158 = sphi 0, %s160
      %s161 = sphi 0, %s158
      %s162 = sphi 0, %s161
      %s178 = sphi 0, %s162
    $region4: #{tpu_custom_call.1} parent=1 // loop_header_branch
      %20 = sbr.rel (%p18) target = $region8
    $region5: #{tpu_custom_call.1} parent=1 // loop_body
      %s22 = ssub.s32 %s17, 1
      %s23 = ssub.s32 %s17, 2
      %s24 = sadd.s32 %s17, 1
      %s25 = ssub.s32 %s17, %s24
      %p26 = scmp.eq.s32.totalorder %s25, 0
      %s28 = sadd.s32 %s27, 1
      %s29 = scalar_select %p26, %s27, %s28
      %p32 = pneg %p26
      %p33 = scmp.eq.s32.totalorder %s17, 1
      %p34 = por %p32, %p33
      %p35 = scmp.ne.s32.totalorder %s27, %s30
      %p36 = scmp.eq.s32.totalorder %s17, 0
      %p37 = por %p35, %p36
      %p38 = scmp.ne.s32.totalorder %s27, %s30
      %p39 = scmp.eq.s32.totalorder %s22, 1
      %p40 = por %p38, %p39
      %p41 = scmp.ne.s32.totalorder %s30, %s31
      %p42 = scmp.eq.s32.totalorder %s22, 0
      %p43 = por %p41, %p42
      %p44 = scmp.ne.s32.totalorder %s30, %s31
      %p45 = scmp.eq.s32.totalorder %s23, 1
      %p46 = por %p44, %p45
      %p48 = scmp.ne.s32.totalorder %s31, %s47
      %p49 = scmp.eq.s32.totalorder %s23, 0
      %p50 = por %p48, %p49
      %s52 = sadd.s32 %s51, 1
      %p55 = scmp.eq.s32.totalorder %s17, 1
      %p56 = scmp.ne.s32.totalorder %s51, %s53
      %p57 = scmp.eq.s32.totalorder %s17, 0
      %p58 = por %p56, %p57
      %p59 = scmp.ne.s32.totalorder %s51, %s53
      %p60 = scmp.eq.s32.totalorder %s22, 1
      %p61 = por %p59, %p60
      %p62 = scmp.ne.s32.totalorder %s53, %s54
      %p63 = scmp.eq.s32.totalorder %s22, 0
      %p64 = por %p62, %p63
      %p65 = scmp.ne.s32.totalorder %s53, %s54
      %p66 = scmp.eq.s32.totalorder %s23, 1
      %p67 = por %p65, %p66
      %p69 = scmp.ne.s32.totalorder %s54, %s68
      %p70 = scmp.eq.s32.totalorder %s23, 0
      %p71 = por %p69, %p70
      %s73 = sadd.s32 %s72, 1
      %p76 = scmp.eq.s32.totalorder %s17, 1
      %p77 = scmp.ne.s32.totalorder %s72, %s74
      %p78 = scmp.eq.s32.totalorder %s17, 0
      %p79 = por %p77, %p78
      %p80 = scmp.ne.s32.totalorder %s72, %s74
      %p81 = scmp.eq.s32.totalorder %s22, 1
      %p82 = por %p80, %p81
      %p83 = scmp.ne.s32.totalorder %s74, %s75
      %p84 = scmp.eq.s32.totalorder %s22, 0
      %p85 = por %p83, %p84
      %p86 = scmp.ne.s32.totalorder %s74, %s75
      %p87 = scmp.eq.s32.totalorder %s23, 1
      %p88 = por %p86, %p87
      %p90 = scmp.ne.s32.totalorder %s75, %s89
      %p91 = scmp.eq.s32.totalorder %s23, 0
      %p92 = por %p90, %p91
      %s94 = sadd.s32 %s93, 1
      %p97 = scmp.eq.s32.totalorder %s17, 1
      %p98 = scmp.ne.s32.totalorder %s93, %s95
      %p99 = scmp.eq.s32.totalorder %s17, 0
      %p100 = por %p98, %p99
      %p101 = scmp.ne.s32.totalorder %s93, %s95
      %p102 = scmp.eq.s32.totalorder %s22, 1
      %p103 = por %p101, %p102
      %p104 = scmp.ne.s32.totalorder %s95, %s96
      %p105 = scmp.eq.s32.totalorder %s22, 0
      %p106 = por %p104, %p105
      %p107 = scmp.ne.s32.totalorder %s95, %s96
      %p108 = scmp.eq.s32.totalorder %s23, 1
      %p109 = por %p107, %p108
      %p111 = scmp.ne.s32.totalorder %s96, %s110
      %p112 = scmp.eq.s32.totalorder %s23, 0
      %p113 = por %p111, %p112
      %s115 = sadd.s32 %s114, 1
      %p118 = scmp.eq.s32.totalorder %s17, 1
      %p119 = scmp.ne.s32.totalorder %s114, %s116
      %p120 = scmp.eq.s32.totalorder %s17, 0
      %p121 = por %p119, %p120
      %p122 = scmp.ne.s32.totalorder %s114, %s116
      %p123 = scmp.eq.s32.totalorder %s22, 1
      %p124 = por %p122, %p123
      %p125 = scmp.ne.s32.totalorder %s116, %s117
      %p126 = scmp.eq.s32.totalorder %s22, 0
      %p127 = por %p125, %p126
      %p128 = scmp.ne.s32.totalorder %s116, %s117
      %p129 = scmp.eq.s32.totalorder %s23, 1
      %p130 = por %p128, %p129
      %p132 = scmp.ne.s32.totalorder %s117, %s131
      %p133 = scmp.eq.s32.totalorder %s23, 0
      %p134 = por %p132, %p133
      %s136 = sadd.s32 %s135, 1
      %p139 = scmp.eq.s32.totalorder %s17, 1
      %p140 = scmp.ne.s32.totalorder %s135, %s137
      %p141 = scmp.eq.s32.totalorder %s17, 0
      %p142 = por %p140, %p141
      %p143 = scmp.ne.s32.totalorder %s135, %s137
      %p144 = scmp.eq.s32.totalorder %s22, 1
      %p145 = por %p143, %p144
      %p146 = scmp.ne.s32.totalorder %s137, %s138
      %p147 = scmp.eq.s32.totalorder %s22, 0
      %p148 = por %p146, %p147
      %p149 = scmp.ne.s32.totalorder %s137, %s138
      %p150 = scmp.eq.s32.totalorder %s23, 1
      %p151 = por %p149, %p150
      %p153 = scmp.ne.s32.totalorder %s138, %s152
      %p154 = scmp.eq.s32.totalorder %s23, 0
      %p155 = por %p153, %p154
      %s156 = ssub.s32 %s17, %s24
      %p157 = scmp.eq.s32.totalorder %s156, 0
      %s159 = sadd.s32 %s158, 1
      %s160 = scalar_select %p157, %s158, %s159
      %p163 = pneg %p157
      %p164 = scmp.eq.s32.totalorder %s17, 1
      %p165 = por %p163, %p164
      %p166 = scmp.ne.s32.totalorder %s158, %s161
      %p167 = scmp.eq.s32.totalorder %s17, 0
      %p168 = por %p166, %p167
      %p169 = scmp.ne.s32.totalorder %s158, %s161
      %p170 = scmp.eq.s32.totalorder %s22, 1
      %p171 = por %p169, %p170
      %p172 = scmp.ne.s32.totalorder %s161, %s162
      %p173 = scmp.eq.s32.totalorder %s22, 0
      %p174 = por %p172, %p173
      %p175 = scmp.ne.s32.totalorder %s161, %s162
      %p176 = scmp.eq.s32.totalorder %s23, 1
      %p177 = por %p175, %p176
      %p179 = scmp.ne.s32.totalorder %s162, %s178
      %p180 = scmp.eq.s32.totalorder %s23, 0
      %p181 = por %p179, %p180
      %p182 = scmp.le.s32.totalorder 1, %s17
      %p183 = scmp.lt.s32.totalorder %s17, 3
      %p184 = pnand %p182, %p183
      %p185 = pneg %p184
      // Predicated region
      $region9: #{tpu_custom_call.1} parent=5 // pred_check
        _
      $region10: #{tpu_custom_call.1} parent=5 // pred_check_branch
        %187 = sbr.rel (%p184) target = $region12
      $region11: #{tpu_custom_call.1} parent=5 // pred_region
        %s188 = ssub.s32 %s17, 1
        // Predicated region
        $region13: #{tpu_custom_call.1} parent=11 // pred_check
          %p189 = pneg %p64
        $region14: #{tpu_custom_call.1} parent=11 // pred_check_branch
          %191 = sbr.rel (%p189) target = $region16
        $region15: #{tpu_custom_call.1} parent=11 // pred_region
          %s193 = ssub.s32 2048, 2048
          %194 = vsyncadd [#allocation5], %s193
          %s195 = sshll.u32 [#allocation4], 4
          %s196 = int_to_ptr.vmem [resolvable:$true] %s195
          %201 = dma.hbm_to_vmem [thread:$0]  %s1, 2048, %s196, [#allocation5], 128, 128, 8
        $region16: #{tpu_custom_call.1} parent=11 // pred_fallthru
          _
        // Predicated region
        $region17: #{tpu_custom_call.1} parent=11 // pred_check
          %p202 = pneg %p85
        $region18: #{tpu_custom_call.1} parent=11 // pred_check_branch
          %204 = sbr.rel (%p202) target = $region20
        $region19: #{tpu_custom_call.1} parent=11 // pred_region
          %s206 = ssub.s32 2048, 2048
          %207 = vsyncadd [#allocation5], %s206
          %s208 = sshll.u32 [#allocation6], 4
          %s209 = int_to_ptr.vmem [resolvable:$true] %s208
          %214 = dma.hbm_to_vmem [thread:$0]  %s2, 2048, %s209, [#allocation5], 128, 128, 8
        $region20: #{tpu_custom_call.1} parent=11 // pred_fallthru
          _
        // Predicated region
        $region21: #{tpu_custom_call.1} parent=11 // pred_check
          %p215 = pneg %p106
        $region22: #{tpu_custom_call.1} parent=11 // pred_check_branch
          %217 = sbr.rel (%p215) target = $region24
        $region23: #{tpu_custom_call.1} parent=11 // pred_region
          %s219 = ssub.s32 2048, 2048
          %220 = vsyncadd [#allocation8], %s219
          %s221 = sshll.u32 [#allocation7], 4
          %s222 = int_to_ptr.vmem [resolvable:$true] %s221
          %227 = dma.hbm_to_vmem [thread:$0]  %s3, 2048, %s222, [#allocation8], 128, 128, 8
        $region24: #{tpu_custom_call.1} parent=11 // pred_fallthru
          _
        // Predicated region
        $region25: #{tpu_custom_call.1} parent=11 // pred_check
          %p228 = pneg %p127
        $region26: #{tpu_custom_call.1} parent=11 // pred_check_branch
          %230 = sbr.rel (%p228) target = $region28
        $region27: #{tpu_custom_call.1} parent=11 // pred_region
          %s232 = ssub.s32 2048, 2048
          %233 = vsyncadd [#allocation8], %s232
          %s234 = sshll.u32 [#allocation9], 4
          %s235 = int_to_ptr.vmem [resolvable:$true] %s234
          %240 = dma.hbm_to_vmem [thread:$0]  %s4, 2048, %s235, [#allocation8], 128, 128, 8
        $region28: #{tpu_custom_call.1} parent=11 // pred_fallthru
          _
        // Predicated region
        $region29: #{tpu_custom_call.1} parent=11 // pred_check
          %p241 = pneg %p148
        $region30: #{tpu_custom_call.1} parent=11 // pred_check_branch
          %243 = sbr.rel (%p241) target = $region32
        $region31: #{tpu_custom_call.1} parent=11 // pred_region
          _
        $region32: #{tpu_custom_call.1} parent=11 // pred_fallthru
          _
      $region12: #{tpu_custom_call.1} parent=5 // pred_fallthru
        _
      %p244 = scmp.lt.s32.totalorder %s17, 2
      // Predicated region
      $region33: #{tpu_custom_call.1} parent=5 // pred_check
        %p245 = pneg %p244
      $region34: #{tpu_custom_call.1} parent=5 // pred_check_branch
        %247 = sbr.rel (%p245) target = $region36
      $region35: #{tpu_custom_call.1} parent=5 // pred_region
        // Predicated region
        $region37: #{tpu_custom_call.1} parent=35 // pred_check
          %p248 = pneg %p37
        $region38: #{tpu_custom_call.1} parent=35 // pred_check_branch
          %250 = sbr.rel (%p248) target = $region40
        $region39: #{tpu_custom_call.1} parent=35 // pred_region
          %s251 = sand.u32 %s27, 1
          %s252 = scalar_lea.sflag [#allocation3], %s251
          %s253 = sand.u32 %s27, 1
          %s254 = smul.addr %s253, 8
          %s255 = scalar_lea.vmem [#allocation2], %s254
          %s257 = ssub.s32 128, 128
          %258 = vsyncadd %s252, %s257
          %s259 = smul.addr %s17, 128
          %s260 = scalar_lea.hbm %s0, %s259
          %s262 = sshll.u32 %s255, 4
          %s263 = int_to_ptr.vmem [resolvable:$true] %s262
          %265 = dma.hbm_to_vmem [thread:$0]  %s260, 128, %s263, %s252
        $region40: #{tpu_custom_call.1} parent=35 // pred_fallthru
          _
      $region36: #{tpu_custom_call.1} parent=5 // pred_fallthru
        _
      %p266 = scmp.le.s32.totalorder 1, %s17
      %p267 = scmp.lt.s32.totalorder %s17, 3
      %p268 = pnand %p266, %p267
      %p269 = pneg %p268
      // Predicated region
      $region41: #{tpu_custom_call.1} parent=5 // pred_check
        _
      $region42: #{tpu_custom_call.1} parent=5 // pred_check_branch
        %271 = sbr.rel (%p268) target = $region44
      $region43: #{tpu_custom_call.1} parent=5 // pred_region
        %s272 = ssub.s32 %s17, 1
        %s273 = sand.u32 %s30, 1
        %s274 = scalar_lea.sflag [#allocation3], %s273
        %s275 = sand.u32 %s30, 1
        %s276 = smul.addr %s275, 8
        %s277 = scalar_lea.vmem [#allocation2], %s276
        // Predicated region
        $region45: #{tpu_custom_call.1} parent=43 // pred_check
          %p278 = pneg %p43
        $region46: #{tpu_custom_call.1} parent=43 // pred_check_branch
          %280 = sbr.rel (%p278) target = $region48
        $region47: #{tpu_custom_call.1} parent=43 // pred_region
          %281 = dma.done %s274, 128
        $region48: #{tpu_custom_call.1} parent=43 // pred_fallthru
          _
        // Predicated region
        $region49: #{tpu_custom_call.1} parent=43 // pred_check
          %p282 = pneg %p64
        $region50: #{tpu_custom_call.1} parent=43 // pred_check_branch
          %284 = sbr.rel (%p282) target = $region52
        $region51: #{tpu_custom_call.1} parent=43 // pred_region
          %285 = dma.done [#allocation5], 2048
        $region52: #{tpu_custom_call.1} parent=43 // pred_fallthru
          _
        // Predicated region
        $region53: #{tpu_custom_call.1} parent=43 // pred_check
          %p286 = pneg %p85
        $region54: #{tpu_custom_call.1} parent=43 // pred_check_branch
          %288 = sbr.rel (%p286) target = $region56
        $region55: #{tpu_custom_call.1} parent=43 // pred_region
          %289 = dma.done [#allocation5], 2048
        $region56: #{tpu_custom_call.1} parent=43 // pred_fallthru
          _
        // Predicated region
        $region57: #{tpu_custom_call.1} parent=43 // pred_check
          %p290 = pneg %p106
        $region58: #{tpu_custom_call.1} parent=43 // pred_check_branch
          %292 = sbr.rel (%p290) target = $region60
        $region59: #{tpu_custom_call.1} parent=43 // pred_region
          %293 = dma.done [#allocation8], 2048
        $region60: #{tpu_custom_call.1} parent=43 // pred_fallthru
          _
        // Predicated region
        $region61: #{tpu_custom_call.1} parent=43 // pred_check
          %p294 = pneg %p127
        $region62: #{tpu_custom_call.1} parent=43 // pred_check_branch
          %296 = sbr.rel (%p294) target = $region64
        $region63: #{tpu_custom_call.1} parent=43 // pred_region
          %297 = dma.done [#allocation8], 2048
        $region64: #{tpu_custom_call.1} parent=43 // pred_fallthru
          _
        %s298 = sand.u32 %s30, 1
        %s299 = scalar_lea.sflag [#allocation3], %s298
        %s300 = sand.u32 %s30, 1
        %s301 = smul.addr %s300, 8
        %s302 = scalar_lea.vmem [#allocation2], %s301
        %p303 = pneg %p43
        %p304 = pneg %p40
        %p305 = pneg %p64
        %p306 = pneg %p61
        %p307 = pneg %p85
        %p308 = pneg %p82
        %p309 = pneg %p106
        %p310 = pneg %p103
        %p311 = pneg %p127
        %p312 = pneg %p124
        %p313 = pneg %p148
        %p314 = pneg %p145
        %p315 = pneg %p174
        %p316 = pneg %p171
        %p317 = scmp.lt.s32.totalorder %s22, 1
        %s318 = scalar_select %p317, %s22, 1
        %s319 = smul.addr %s318, 8
        %s320 = scalar_lea.vmem %s6, %s319
        %p321 = scmp.lt.s32.totalorder %s22, 1
        %s322 = scalar_select %p321, %s22, 1
        %s323 = smul.addr %s322, 8
        %s324 = scalar_lea.vmem %s6, %s323
        %v325 = vld [vmem:[%s277] sm:$0xff]
        %v326 = vld [vmem:[%s5] sm:$0x1]
        %v327 = vld [vmem:[%s5 + $0x1] sm:$0x1]
        %v328 = vld [vmem:[%s5 + $0x2] sm:$0x1]
        %v329 = vld [vmem:[%s5 + $0x3] sm:$0x1]
        %v330 = vld [vmem:[%s5 + $0x4] sm:$0x1]
        %v331 = vld [vmem:[#allocation4] sm:$0xff]
        %v332 = vld [vmem:[#allocation4 + $0x8] sm:$0xff]
        %v333 = vld [vmem:[#allocation4 + $0x10] sm:$0xff]
        %v334 = vld [vmem:[#allocation4 + $0x18] sm:$0xff]
        %v335 = vld [vmem:[#allocation4 + $0x20] sm:$0xff]
        %v336 = vld [vmem:[#allocation4 + $0x28] sm:$0xff]
        %v337 = vld [vmem:[#allocation4 + $0x30] sm:$0xff]
        %v338 = vld [vmem:[#allocation4 + $0x38] sm:$0xff]
        %v339 = vld [vmem:[#allocation4 + $0x40] sm:$0xff]
        %v340 = vld [vmem:[#allocation4 + $0x48] sm:$0xff]
        %v341 = vld [vmem:[#allocation4 + $0x50] sm:$0xff]
        %v342 = vld [vmem:[#allocation4 + $0x58] sm:$0xff]
        %v343 = vld [vmem:[#allocation4 + $0x60] sm:$0xff]
        %v344 = vld [vmem:[#allocation4 + $0x68] sm:$0xff]
        %v345 = vld [vmem:[#allocation4 + $0x70] sm:$0xff]
        %v346 = vld [vmem:[#allocation4 + $0x78] sm:$0xff]
        %v347 = vlaneseq
        %v348 = vshrl.u32 %v347, 7
        %v349 = vsub.s32 0, %v348
        %v350 = vrot.slane %v326, %v349
        %351 = vmatprep.subr.mxu0 0.0
        %352 = vmatpush1.msra.mxu0 %v331
        %353 = vmatprep.subr.mxu0 0.0
        %354 = vmatpush1.msra.mxu0 %v332
        %355 = vmatprep.subr.mxu0 0.0
        %356 = vmatpush1.msra.mxu0 %v333
        %357 = vmatprep.subr.mxu0 0.0
        %358 = vmatpush1.msra.mxu0 %v334
        %359 = vmatprep.subr.mxu0 0.0
        %360 = vmatpush1.msra.mxu0 %v335
        %361 = vmatprep.subr.mxu0 0.0
        %362 = vmatpush1.msra.mxu0 %v336
        %363 = vmatprep.subr.mxu0 0.0
        %364 = vmatpush1.msra.mxu0 %v337
        %365 = vmatprep.subr.mxu0 0.0
        %366 = vmatpush1.msra.mxu0 %v338
        %367 = vmatprep.subr.mxu0 0.0
        %368 = vmatpush1.msra.mxu0 %v339
        %369 = vmatprep.subr.mxu0 0.0
        %370 = vmatpush1.msra.mxu0 %v340
        %371 = vmatprep.subr.mxu0 0.0
        %372 = vmatpush1.msra.mxu0 %v341
        %373 = vmatprep.subr.mxu0 0.0
        %374 = vmatpush1.msra.mxu0 %v342
        %375 = vmatprep.subr.mxu0 0.0
        %376 = vmatpush1.msra.mxu0 %v343
        %377 = vmatprep.subr.mxu0 0.0
        %378 = vmatpush1.msra.mxu0 %v344
        %379 = vmatprep.subr.mxu0 0.0
        %380 = vmatpush1.msra.mxu0 %v345
        %381 = vmatprep.subr.mxu0 0.0
        %382 = vmatpush1.msra.mxu0 %v346
        %383 = vmatprep.subr.mxu0 0.0
        %384 = vmatpush1.msra.mxu0 0.0
        %385 = vmatprep.subr.mxu0 0.0
        %386 = vmatpush1.msra.mxu0 0.0
        %387 = vmatprep.subr.mxu0 0.0
        %388 = vmatpush1.msra.mxu0 0.0
        %389 = vmatprep.subr.mxu0 0.0
        %390 = vmatpush1.msra.mxu0 0.0
        %391 = vmatprep.subr.mxu0 0.0
        %392 = vmatpush1.msra.mxu0 0.0
        %393 = vmatprep.subr.mxu0 0.0
        %394 = vmatpush1.msra.mxu0 0.0
        %395 = vmatprep.subr.mxu0 0.0
        %396 = vmatpush1.msra.mxu0 0.0
        %397 = vmatprep.subr.mxu0 0.0
        %398 = vmatpush1.msra.mxu0 0.0
        %399 = vmatprep.subr.mxu0 0.0
        %400 = vmatpush1.msra.mxu0 0.0
        %401 = vmatprep.subr.mxu0 0.0
        %402 = vmatpush1.msra.mxu0 0.0
        %403 = vmatprep.subr.mxu0 0.0
        %404 = vmatpush1.msra.mxu0 0.0
        %405 = vmatprep.subr.mxu0 0.0
        %406 = vmatpush1.msra.mxu0 0.0
        %407 = vmatprep.subr.mxu0 0.0
        %408 = vmatpush1.msra.mxu0 0.0
        %409 = vmatprep.subr.mxu0 0.0
        %410 = vmatpush1.msra.mxu0 0.0
        %411 = vmatprep.subr.mxu0 0.0
        %412 = vmatpush1.msra.mxu0 0.0
        %413 = vmatprep.subr.mxu0 0.0
        %414 = vmatpush1.msra.mxu0 0.0
        %415 = vmatprep.mubr.f32.mxu0 0.0
        %416 = vmatmul.mubr.f32.gmra.mrb[0].mxu0 %v325
        %v417 = vpop.f32.mrb[0].mxu0
        %v418 = vadd.f32 %v350, %v417
        %v419 = vpop.f32.mrb[0].mxu0
        %420 = vdwg.mxu0
        %vm421 = vcmp.gt.f32.partialorder %v418, 0.0
        %v422 = vmin.f32 %v418, 0.0
        %v423 = vmul.f32 %v422, 1.442695
        %v424 = vpow.pop %v423
        %v425 = vsub.f32 %v424, 1.0
        %v426 = vsel %vm421, %v418, %v425
        %v427 = vld [vmem:[#allocation6] sm:$0xff]
        %v428 = vld [vmem:[#allocation6 + $0x8] sm:$0xff]
        %v429 = vld [vmem:[#allocation6 + $0x10] sm:$0xff]
        %v430 = vld [vmem:[#allocation6 + $0x18] sm:$0xff]
        %v431 = vld [vmem:[#allocation6 + $0x20] sm:$0xff]
        %v432 = vld [vmem:[#allocation6 + $0x28] sm:$0xff]
        %v433 = vld [vmem:[#allocation6 + $0x30] sm:$0xff]
        %v434 = vld [vmem:[#allocation6 + $0x38] sm:$0xff]
        %v435 = vld [vmem:[#allocation6 + $0x40] sm:$0xff]
        %v436 = vld [vmem:[#allocation6 + $0x48] sm:$0xff]
        %v437 = vld [vmem:[#allocation6 + $0x50] sm:$0xff]
        %v438 = vld [vmem:[#allocation6 + $0x58] sm:$0xff]
        %v439 = vld [vmem:[#allocation6 + $0x60] sm:$0xff]
        %v440 = vld [vmem:[#allocation6 + $0x68] sm:$0xff]
        %v441 = vld [vmem:[#allocation6 + $0x70] sm:$0xff]
        %v442 = vld [vmem:[#allocation6 + $0x78] sm:$0xff]
        %v443 = vld [vmem:[#allocation7] sm:$0xff]
        %v444 = vld [vmem:[#allocation7 + $0x8] sm:$0xff]
        %v445 = vld [vmem:[#allocation7 + $0x10] sm:$0xff]
        %v446 = vld [vmem:[#allocation7 + $0x18] sm:$0xff]
        %v447 = vld [vmem:[#allocation7 + $0x20] sm:$0xff]
        %v448 = vld [vmem:[#allocation7 + $0x28] sm:$0xff]
        %v449 = vld [vmem:[#allocation7 + $0x30] sm:$0xff]
        %v450 = vld [vmem:[#allocation7 + $0x38] sm:$0xff]
        %v451 = vld [vmem:[#allocation7 + $0x40] sm:$0xff]
        %v452 = vld [vmem:[#allocation7 + $0x48] sm:$0xff]
        %v453 = vld [vmem:[#allocation7 + $0x50] sm:$0xff]
        %v454 = vld [vmem:[#allocation7 + $0x58] sm:$0xff]
        %v455 = vld [vmem:[#allocation7 + $0x60] sm:$0xff]
        %v456 = vld [vmem:[#allocation7 + $0x68] sm:$0xff]
        %v457 = vld [vmem:[#allocation7 + $0x70] sm:$0xff]
        %v458 = vld [vmem:[#allocation7 + $0x78] sm:$0xff]
        %459 = vmatprep.subr.mxu0 0.0
        %460 = vmatpush1.msra.mxu0 %v443
        %461 = vmatprep.subr.mxu0 0.0
        %462 = vmatpush1.msra.mxu0 %v444
        %463 = vmatprep.subr.mxu0 0.0
        %464 = vmatpush1.msra.mxu0 %v445
        %465 = vmatprep.subr.mxu0 0.0
        %466 = vmatpush1.msra.mxu0 %v446
        %467 = vmatprep.subr.mxu0 0.0
        %468 = vmatpush1.msra.mxu0 %v447
        %469 = vmatprep.subr.mxu0 0.0
        %470 = vmatpush1.msra.mxu0 %v448
        %471 = vmatprep.subr.mxu0 0.0
        %472 = vmatpush1.msra.mxu0 %v449
        %473 = vmatprep.subr.mxu0 0.0
        %474 = vmatpush1.msra.mxu0 %v450
        %475 = vmatprep.subr.mxu0 0.0
        %476 = vmatpush1.msra.mxu0 %v451
        %477 = vmatprep.subr.mxu0 0.0
        %478 = vmatpush1.msra.mxu0 %v452
        %479 = vmatprep.subr.mxu0 0.0
        %480 = vmatpush1.msra.mxu0 %v453
        %481 = vmatprep.subr.mxu0 0.0
        %482 = vmatpush1.msra.mxu0 %v454
        %483 = vmatprep.subr.mxu0 0.0
        %484 = vmatpush1.msra.mxu0 %v455
        %485 = vmatprep.subr.mxu0 0.0
        %486 = vmatpush1.msra.mxu0 %v456
        %487 = vmatprep.subr.mxu0 0.0
        %488 = vmatpush1.msra.mxu0 %v457
        %489 = vmatprep.subr.mxu0 0.0
        %490 = vmatpush1.msra.mxu0 %v458
        %491 = vmatprep.subr.mxu0 0.0
        %492 = vmatpush1.msra.mxu0 0.0
        %493 = vmatprep.subr.mxu0 0.0
        %494 = vmatpush1.msra.mxu0 0.0
        %495 = vmatprep.subr.mxu0 0.0
        %496 = vmatpush1.msra.mxu0 0.0
        %497 = vmatprep.subr.mxu0 0.0
        %498 = vmatpush1.msra.mxu0 0.0
        %499 = vmatprep.subr.mxu0 0.0
        %500 = vmatpush1.msra.mxu0 0.0
        %501 = vmatprep.subr.mxu0 0.0
        %502 = vmatpush1.msra.mxu0 0.0
        %503 = vmatprep.subr.mxu0 0.0
        %504 = vmatpush1.msra.mxu0 0.0
        %505 = vmatprep.subr.mxu0 0.0
        %506 = vmatpush1.msra.mxu0 0.0
        %507 = vmatprep.subr.mxu0 0.0
        %508 = vmatpush1.msra.mxu0 0.0
        %509 = vmatprep.subr.mxu0 0.0
        %510 = vmatpush1.msra.mxu0 0.0
        %511 = vmatprep.subr.mxu0 0.0
        %512 = vmatpush1.msra.mxu0 0.0
        %513 = vmatprep.subr.mxu0 0.0
        %514 = vmatpush1.msra.mxu0 0.0
        %515 = vmatprep.subr.mxu0 0.0
        %516 = vmatpush1.msra.mxu0 0.0
        %517 = vmatprep.subr.mxu0 0.0
        %518 = vmatpush1.msra.mxu0 0.0
        %519 = vmatprep.subr.mxu0 0.0
        %520 = vmatpush1.msra.mxu0 0.0
        %521 = vmatprep.subr.mxu0 0.0
        %522 = vmatpush1.msra.mxu0 0.0
        %523 = vmatprep.mubr.f32.mxu0 0.0
        %524 = vmatmul.mubr.f32.gmra.mrb[0].mxu0 %v325
        %v525 = vpop.f32.mrb[0].mxu0
        %v526 = vadd.f32 0.0, %v525
        %v527 = vpop.f32.mrb[0].mxu0
        %528 = vdwg.mxu0
        %529 = vmatprep.subr.mxu0 0.0
        %530 = vmatpush1.msra.mxu0 %v427
        %531 = vmatprep.subr.mxu0 0.0
        %532 = vmatpush1.msra.mxu0 %v428
        %533 = vmatprep.subr.mxu0 0.0
        %534 = vmatpush1.msra.mxu0 %v429
        %535 = vmatprep.subr.mxu0 0.0
        %536 = vmatpush1.msra.mxu0 %v430
        %537 = vmatprep.subr.mxu0 0.0
        %538 = vmatpush1.msra.mxu0 %v431
        %539 = vmatprep.subr.mxu0 0.0
        %540 = vmatpush1.msra.mxu0 %v432
        %541 = vmatprep.subr.mxu0 0.0
        %542 = vmatpush1.msra.mxu0 %v433
        %543 = vmatprep.subr.mxu0 0.0
        %544 = vmatpush1.msra.mxu0 %v434
        %545 = vmatprep.subr.mxu0 0.0
        %546 = vmatpush1.msra.mxu0 %v435
        %547 = vmatprep.subr.mxu0 0.0
        %548 = vmatpush1.msra.mxu0 %v436
        %549 = vmatprep.subr.mxu0 0.0
        %550 = vmatpush1.msra.mxu0 %v437
        %551 = vmatprep.subr.mxu0 0.0
        %552 = vmatpush1.msra.mxu0 %v438
        %553 = vmatprep.subr.mxu0 0.0
        %554 = vmatpush1.msra.mxu0 %v439
        %555 = vmatprep.subr.mxu0 0.0
        %556 = vmatpush1.msra.mxu0 %v440
        %557 = vmatprep.subr.mxu0 0.0
        %558 = vmatpush1.msra.mxu0 %v441
        %559 = vmatprep.subr.mxu0 0.0
        %560 = vmatpush1.msra.mxu0 %v442
        %561 = vmatprep.subr.mxu0 0.0
        %562 = vmatpush1.msra.mxu0 0.0
        %563 = vmatprep.subr.mxu0 0.0
        %564 = vmatpush1.msra.mxu0 0.0
        %565 = vmatprep.subr.mxu0 0.0
        %566 = vmatpush1.msra.mxu0 0.0
        %567 = vmatprep.subr.mxu0 0.0
        %568 = vmatpush1.msra.mxu0 0.0
        %569 = vmatprep.subr.mxu0 0.0
        %570 = vmatpush1.msra.mxu0 0.0
        %571 = vmatprep.subr.mxu0 0.0
        %572 = vmatpush1.msra.mxu0 0.0
        %573 = vmatprep.subr.mxu0 0.0
        %574 = vmatpush1.msra.mxu0 0.0
        %575 = vmatprep.subr.mxu0 0.0
        %576 = vmatpush1.msra.mxu0 0.0
        %577 = vmatprep.subr.mxu0 0.0
        %578 = vmatpush1.msra.mxu0 0.0
        %579 = vmatprep.subr.mxu0 0.0
        %580 = vmatpush1.msra.mxu0 0.0
        %581 = vmatprep.subr.mxu0 0.0
        %582 = vmatpush1.msra.mxu0 0.0
        %583 = vmatprep.subr.mxu0 0.0
        %584 = vmatpush1.msra.mxu0 0.0
        %585 = vmatprep.subr.mxu0 0.0
        %586 = vmatpush1.msra.mxu0 0.0
        %587 = vmatprep.subr.mxu0 0.0
        %588 = vmatpush1.msra.mxu0 0.0
        %589 = vmatprep.subr.mxu0 0.0
        %590 = vmatpush1.msra.mxu0 0.0
        %591 = vmatprep.subr.mxu0 0.0
        %592 = vmatpush1.msra.mxu0 0.0
        %593 = vmatprep.mubr.f32.mxu0 0.0
        %594 = vmatmul.mubr.f32.gmra.mrb[0].mxu0 %v426
        %v595 = vpop.f32.mrb[0].mxu0
        %v596 = vadd.f32 %v526, %v595
        %v597 = vpop.f32.mrb[0].mxu0
        %598 = vdwg.mxu0
        %v599 = vlaneseq
        %v600 = vshrl.u32 %v599, 7
        %v601 = vsub.s32 0, %v600
        %v602 = vrot.slane %v327, %v601
        %v603 = vadd.f32 %v596, %v602
        %vm604 = vcmp.gt.f32.partialorder %v603, 0.0
        %v605 = vmin.f32 %v603, 0.0
        %v606 = vmul.f32 %v605, 1.442695
        %v607 = vpow.pop %v606
        %v608 = vsub.f32 %v607, 1.0
        %v609 = vsel %vm604, %v603, %v608
        %v610 = vld [vmem:[#allocation9] sm:$0xff]
        %v611 = vld [vmem:[#allocation9 + $0x8] sm:$0xff]
        %v612 = vld [vmem:[#allocation9 + $0x10] sm:$0xff]
        %v613 = vld [vmem:[#allocation9 + $0x18] sm:$0xff]
        %v614 = vld [vmem:[#allocation9 + $0x20] sm:$0xff]
        %v615 = vld [vmem:[#allocation9 + $0x28] sm:$0xff]
        %v616 = vld [vmem:[#allocation9 + $0x30] sm:$0xff]
        %v617 = vld [vmem:[#allocation9 + $0x38] sm:$0xff]
        %v618 = vld [vmem:[#allocation9 + $0x40] sm:$0xff]
        %v619 = vld [vmem:[#allocation9 + $0x48] sm:$0xff]
        %v620 = vld [vmem:[#allocation9 + $0x50] sm:$0xff]
        %v621 = vld [vmem:[#allocation9 + $0x58] sm:$0xff]
        %v622 = vld [vmem:[#allocation9 + $0x60] sm:$0xff]
        %v623 = vld [vmem:[#allocation9 + $0x68] sm:$0xff]
        %v624 = vld [vmem:[#allocation9 + $0x70] sm:$0xff]
        %v625 = vld [vmem:[#allocation9 + $0x78] sm:$0xff]
        %v626 = vlaneseq
        %v627 = vshrl.u32 %v626, 7
        %v628 = vsub.s32 0, %v627
        %v629 = vrot.slane %v328, %v628
        %630 = vmatprep.subr.mxu0 0.0
        %631 = vmatpush1.msra.mxu0 %v610
        %632 = vmatprep.subr.mxu0 0.0
        %633 = vmatpush1.msra.mxu0 %v611
        %634 = vmatprep.subr.mxu0 0.0
        %635 = vmatpush1.msra.mxu0 %v612
        %636 = vmatprep.subr.mxu0 0.0
        %637 = vmatpush1.msra.mxu0 %v613
        %638 = vmatprep.subr.mxu0 0.0
        %639 = vmatpush1.msra.mxu0 %v614
        %640 = vmatprep.subr.mxu0 0.0
        %641 = vmatpush1.msra.mxu0 %v615
        %642 = vmatprep.subr.mxu0 0.0
        %643 = vmatpush1.msra.mxu0 %v616
        %644 = vmatprep.subr.mxu0 0.0
        %645 = vmatpush1.msra.mxu0 %v617
        %646 = vmatprep.subr.mxu0 0.0
        %647 = vmatpush1.msra.mxu0 %v618
        %648 = vmatprep.subr.mxu0 0.0
        %649 = vmatpush1.msra.mxu0 %v619
        %650 = vmatprep.subr.mxu0 0.0
        %651 = vmatpush1.msra.mxu0 %v620
        %652 = vmatprep.subr.mxu0 0.0
        %653 = vmatpush1.msra.mxu0 %v621
        %654 = vmatprep.subr.mxu0 0.0
        %655 = vmatpush1.msra.mxu0 %v622
        %656 = vmatprep.subr.mxu0 0.0
        %657 = vmatpush1.msra.mxu0 %v623
        %658 = vmatprep.subr.mxu0 0.0
        %659 = vmatpush1.msra.mxu0 %v624
        %660 = vmatprep.subr.mxu0 0.0
        %661 = vmatpush1.msra.mxu0 %v625
        %662 = vmatprep.subr.mxu0 0.0
        %663 = vmatpush1.msra.mxu0 0.0
        %664 = vmatprep.subr.mxu0 0.0
        %665 = vmatpush1.msra.mxu0 0.0
        %666 = vmatprep.subr.mxu0 0.0
        %667 = vmatpush1.msra.mxu0 0.0
        %668 = vmatprep.subr.mxu0 0.0
        %669 = vmatpush1.msra.mxu0 0.0
        %670 = vmatprep.subr.mxu0 0.0
        %671 = vmatpush1.msra.mxu0 0.0
        %672 = vmatprep.subr.mxu0 0.0
        %673 = vmatpush1.msra.mxu0 0.0
        %674 = vmatprep.subr.mxu0 0.0
        %675 = vmatpush1.msra.mxu0 0.0
        %676 = vmatprep.subr.mxu0 0.0
        %677 = vmatpush1.msra.mxu0 0.0
        %678 = vmatprep.subr.mxu0 0.0
        %679 = vmatpush1.msra.mxu0 0.0
        %680 = vmatprep.subr.mxu0 0.0
        %681 = vmatpush1.msra.mxu0 0.0
        %682 = vmatprep.subr.mxu0 0.0
        %683 = vmatpush1.msra.mxu0 0.0
        %684 = vmatprep.subr.mxu0 0.0
        %685 = vmatpush1.msra.mxu0 0.0
        %686 = vmatprep.subr.mxu0 0.0
        %687 = vmatpush1.msra.mxu0 0.0
        %688 = vmatprep.subr.mxu0 0.0
        %689 = vmatpush1.msra.mxu0 0.0
        %690 = vmatprep.subr.mxu0 0.0
        %691 = vmatpush1.msra.mxu0 0.0
        %692 = vmatprep.subr.mxu0 0.0
        %693 = vmatpush1.msra.mxu0 0.0
        %694 = vmatprep.mubr.f32.mxu0 0.0
        %695 = vmatmul.mubr.f32.gmra.mrb[0].mxu0 %v609
        %v696 = vpop.f32.mrb[0].mxu0
        %v697 = vadd.f32 %v629, %v696
        %v698 = vpop.f32.mrb[0].mxu0
        %699 = vdwg.mxu0
        %vm700 = vcmp.gt.f32.partialorder %v697, 0.0
        %v701 = vmin.f32 %v697, 0.0
        %v702 = vmul.f32 %v701, 1.442695
        %v703 = vpow.pop %v702
        %v704 = vsub.f32 %v703, 1.0
        %v705 = vsel %vm700, %v697, %v704
        %v706 = vlaneseq
        %v707 = vshrl.u32 %v706, 7
        %v708 = vsub.s32 0, %v707
        %v709 = vrot.slane %v329, %v708
        %v710 = vmul.f32 %v705, %v709
        %711 = vadd.xlane.f32.xlu0 %v710
        %v712 = vpop.xlane.xlu0 %711
        %v713 = vlaneseq
        %v714 = vshrl.u32 %v713, 7
        %v715 = vsub.s32 0, %v714
        %v716 = vrot.slane %v330, %v715
        %v717 = vadd.f32 %v712, %v716
        %vm718 = vcmask 7168
        %719 = vst.msk [vmem:[%s324] sm:$0xff] %vm718, %v717
        %p720 = scmp.lt.s32.totalorder %s22, 1
        %s721 = scalar_select %p720, %s22, 1
        %s722 = smul.addr %s721, 8
        %s723 = scalar_lea.vmem %s6, %s722
        // Predicated region
        $region65: #{tpu_custom_call.1} parent=43 // pred_check
          %p724 = pneg %p171
        $region66: #{tpu_custom_call.1} parent=43 // pred_check_branch
          %726 = sbr.rel (%p724) target = $region68
        $region67: #{tpu_custom_call.1} parent=43 // pred_region
          _
        $region68: #{tpu_custom_call.1} parent=43 // pred_fallthru
          _
      $region44: #{tpu_custom_call.1} parent=5 // pred_fallthru
        _
      %p727 = scmp.le.s32.totalorder 2, %s17
      // Predicated region
      $region69: #{tpu_custom_call.1} parent=5 // pred_check
        %p728 = pneg %p727
      $region70: #{tpu_custom_call.1} parent=5 // pred_check_branch
        %730 = sbr.rel (%p728) target = $region72
      $region71: #{tpu_custom_call.1} parent=5 // pred_region
        %s731 = ssub.s32 %s17, 2
        // Predicated region
        $region73: #{tpu_custom_call.1} parent=71 // pred_check
          %p732 = pneg %p177
        $region74: #{tpu_custom_call.1} parent=71 // pred_check_branch
          %734 = sbr.rel (%p732) target = $region76
        $region75: #{tpu_custom_call.1} parent=71 // pred_region
          %p735 = scmp.lt.s32.totalorder %s23, 1
          %s736 = scalar_select %p735, %s23, 1
          %s737 = smul.addr %s736, 8
          %s738 = scalar_lea.vmem %s6, %s737
        $region76: #{tpu_custom_call.1} parent=71 // pred_fallthru
          _
      $region72: #{tpu_custom_call.1} parent=5 // pred_fallthru
        _
    $region6: #{tpu_custom_call.1} parent=1 // loop_footer
      %s21 = sadd.s32 1, %s17
    $region7: #{tpu_custom_call.1} parent=1 // loop_footer_branch
      %16 = sbr.rel target = $region3
    $region8: #{tpu_custom_call.1} parent=1 // loop_exit
      _
    %739 = vsyncpa [#allocation3], 1
    %s740 = scalar_lea.sflag [#allocation3], 1
    %741 = vsyncpa %s740, 1
    %742 = vsyncpa [#allocation5], 1
    %743 = vsyncpa [#allocation8], 1

</llo_original>
